<compile_context>
chip_gen: v6e
topology: v6e:2x2x1
jax: 0.10.0
libtpu: 0.0.40
codegen_flags: <defaults>
</compile_context>

<pallas_src>
import jax
import jax.numpy as jnp
from jax.experimental import pallas as pl
from jax.experimental.pallas import tpu as pltpu

OUT_PAD = 128  # lane-dense padded width of the final layer


def mlp_kernel(x_ref,
               w1_ref, b1_ref,
               w2_ref, b2_ref,
               w3_ref, b3_ref,
               w4_ref, b4_ref,
               w5_ref, b5_ref,
               o_ref):
    x = x_ref[...]  # (TB, 2) f32

    # Layer 1: Linear(2 -> 128) + ReLU.  K=2 contraction -> two broadcast FMAs
    # on the VPU instead of a nearly-empty MXU pass.
    h = (x[:, 0:1] * w1_ref[0:1, :]
         + x[:, 1:2] * w1_ref[1:2, :]
         + b1_ref[...])
    h = jnp.maximum(h, 0.0).astype(jnp.bfloat16)

    # Layer 2: Linear(128 -> 256) + ReLU  (bf16 MXU, f32 accumulate)
    h = jnp.dot(h, w2_ref[...], preferred_element_type=jnp.float32) + b2_ref[...]
    h = jnp.maximum(h, 0.0).astype(jnp.bfloat16)

    # Layer 3: Linear(256 -> 128) + ReLU
    h = jnp.dot(h, w3_ref[...], preferred_element_type=jnp.float32) + b3_ref[...]
    h = jnp.maximum(h, 0.0).astype(jnp.bfloat16)

    # Layer 4: Linear(128 -> 64) + ReLU
    h = jnp.dot(h, w4_ref[...], preferred_element_type=jnp.float32) + b4_ref[...]
    h = jnp.maximum(h, 0.0).astype(jnp.bfloat16)

    # Layer 5: Linear(64 -> 128-padded 10), no activation.  Columns 10..127 of
    # w5/b5 are zero, so the extra lanes carry zeros and are sliced off outside.
    h = jnp.dot(h, w5_ref[...], preferred_element_type=jnp.float32) + b5_ref[...]
    o_ref[...] = h.astype(o_ref.dtype)


def classifier_forward(x, params, tb=512):
    """x: (B, 2) float32; params: list of 5 (W_(in,out), b_(1,out)) tuples (f32)."""
    B, d_in = x.shape
    assert d_in == 2

    (w1, b1), (w2, b2), (w3, b3), (w4, b4), (w5, b5) = params

    # Pad the final layer to 128 output lanes so the kernel's store is lane-dense.
    w5p = jnp.zeros((w5.shape[0], OUT_PAD), jnp.float32).at[:, :w5.shape[1]].set(w5)
    b5p = jnp.zeros((1, OUT_PAD), jnp.float32).at[:, :b5.shape[1]].set(b5)

    # Weights for MXU layers are pre-cast to bf16 once here (not per grid step);
    # layer-1 weights stay f32 for the VPU path, biases stay f32.
    weights = [
        w1.astype(jnp.float32), b1.astype(jnp.float32),
        w2.astype(jnp.bfloat16), b2.astype(jnp.float32),
        w3.astype(jnp.bfloat16), b3.astype(jnp.float32),
        w4.astype(jnp.bfloat16), b4.astype(jnp.float32),
        w5p.astype(jnp.bfloat16), b5p.astype(jnp.float32),
    ]

    # Batch tile: multiple of 8 sublanes, capped at `tb` (sized well under the
    # 16/32 MiB scoped-VMEM defaults with resident bf16 weights ~0.15 MiB).
    TB = min(tb, max(8, ((B + 7) // 8) * 8))
    B_pad = ((B + TB - 1) // TB) * TB
    if B_pad != B:
        x = jnp.pad(x, ((0, B_pad - B), (0, 0)))
    nb = B_pad // TB

    x_spec = pl.BlockSpec((TB, 2), lambda i: (i, 0))
    w_specs = [pl.BlockSpec(a.shape, lambda i: (0, 0)) for a in weights]
    out_spec = pl.BlockSpec((TB, OUT_PAD), lambda i: (i, 0))

    out = pl.pallas_call(
        mlp_kernel,
        out_shape=jax.ShapeDtypeStruct((B_pad, OUT_PAD), jnp.float32),
        grid=(nb,),
        in_specs=[x_spec] + w_specs,
        out_specs=out_spec,
        compiler_params=pltpu.CompilerParams(
            dimension_semantics=("parallel",)),
    )(x, *weights)

    return out[:B, :10]


def init_params(key):
    """Deterministic init matching nn.Linear shapes.

    Weights stored as (in, out); biases stored as (1, out) (PyTorch keeps (out,) —
    reshape when loading real nn.Linear weights).
    """
    dims = [2, 128, 256, 128, 64, 10]
    params = []
    for i in range(len(dims) - 1):
        key, kw, kb = jax.random.split(key, 3)
        fan_in = dims[i]
        bound = 1.0 / jnp.sqrt(fan_in)
        w = jax.random.uniform(kw, (dims[i], dims[i + 1]),
                               minval=-bound, maxval=bound, dtype=jnp.float32)
        b = jax.random.uniform(kb, (1, dims[i + 1]),
                               minval=-bound, maxval=bound, dtype=jnp.float32)
        params.append((w, b))
    return params


def reference_forward(x, params):
    """Pure-f32 reference of the PyTorch module."""
    h = x
    for i, (w, b) in enumerate(params):
        h = h @ w + b
        if i < len(params) - 1:
            h = jnp.maximum(h, 0.0)
    return h


if __name__ == "__main__":
    key = jax.random.PRNGKey(0)
    key, kx = jax.random.split(key)
    B = 8
    x = jax.random.normal(kx, (B, 2), dtype=jnp.float32)

    params = init_params(key)

    out = classifier_forward(x, params)
    out = jax.block_until_ready(out)

    ref = reference_forward(x, params)
    assert out.shape == (B, 10), out.shape
    # Kernel uses bf16 matmul inputs (f32 accumulate), so compare against the
    # f32 reference with a bf16-appropriate tolerance.
    assert jnp.allclose(out, ref, atol=3e-2, rtol=3e-2), "mismatch vs reference"

    print("KERNEL_OK")
</pallas_src>

<mosaic_0001>
module attributes {stable_mosaic.version = 11 : i64} {
  func.func @mlp_kernel(%arg0: i32, %arg1: memref<8x2xf32, #tpu.memory_space<vmem>>, %arg2: memref<2x128xf32, #tpu.memory_space<vmem>>, %arg3: memref<1x128xf32, #tpu.memory_space<vmem>>, %arg4: memref<128x256xbf16, #tpu.memory_space<vmem>>, %arg5: memref<1x256xf32, #tpu.memory_space<vmem>>, %arg6: memref<256x128xbf16, #tpu.memory_space<vmem>>, %arg7: memref<1x128xf32, #tpu.memory_space<vmem>>, %arg8: memref<128x64xbf16, #tpu.memory_space<vmem>>, %arg9: memref<1x64xf32, #tpu.memory_space<vmem>>, %arg10: memref<64x128xbf16, #tpu.memory_space<vmem>>, %arg11: memref<1x128xf32, #tpu.memory_space<vmem>>, %arg12: memref<8x128xf32, #tpu.memory_space<vmem>>) attributes {dimension_semantics = [#tpu.dimension_semantics<parallel>], iteration_bounds = array<i64: 1>, scalar_prefetch = 0 : i64, scratch_operands = 0 : i64, tpu.core_type = #tpu.core_type<tc>, window_params = [{transform_indices = @transform_0, window_bounds = array<i64: 8, 2>}, {pipeline_mode = #tpu.pipeline_mode<synchronous>, transform_indices = @transform_1, window_bounds = array<i64: 2, 128>}, {pipeline_mode = #tpu.pipeline_mode<synchronous>, transform_indices = @transform_2, window_bounds = array<i64: 1, 128>}, {pipeline_mode = #tpu.pipeline_mode<synchronous>, transform_indices = @transform_3, window_bounds = array<i64: 128, 256>}, {pipeline_mode = #tpu.pipeline_mode<synchronous>, transform_indices = @transform_4, window_bounds = array<i64: 1, 256>}, {pipeline_mode = #tpu.pipeline_mode<synchronous>, transform_indices = @transform_5, window_bounds = array<i64: 256, 128>}, {pipeline_mode = #tpu.pipeline_mode<synchronous>, transform_indices = @transform_6, window_bounds = array<i64: 1, 128>}, {pipeline_mode = #tpu.pipeline_mode<synchronous>, transform_indices = @transform_7, window_bounds = array<i64: 128, 64>}, {pipeline_mode = #tpu.pipeline_mode<synchronous>, transform_indices = @transform_8, window_bounds = array<i64: 1, 64>}, {pipeline_mode = #tpu.pipeline_mode<synchronous>, transform_indices = @transform_9, window_bounds = array<i64: 64, 128>}, {pipeline_mode = #tpu.pipeline_mode<synchronous>, transform_indices = @transform_10, window_bounds = array<i64: 1, 128>}, {transform_indices = @transform_11, window_bounds = array<i64: 8, 128>}]} {
    %c0 = arith.constant 0 : index
    %c0_0 = arith.constant 0 : index
    %0 = vector.load %arg1[%c0, %c0_0] : memref<8x2xf32, #tpu.memory_space<vmem>>, vector<8x2xf32>
    %1 = vector.extract_strided_slice %0 {offsets = [0, 0], sizes = [8, 1], strides = [1, 1]} : vector<8x2xf32> to vector<8x1xf32>
    %c0_1 = arith.constant 0 : index
    %c0_2 = arith.constant 0 : index
    %2 = vector.load %arg2[%c0_1, %c0_2] : memref<2x128xf32, #tpu.memory_space<vmem>>, vector<1x128xf32>
    %3 = vector.broadcast %1 : vector<8x1xf32> to vector<8x128xf32>
    %4 = vector.broadcast %2 : vector<1x128xf32> to vector<8x128xf32>
    %5 = arith.mulf %3, %4 : vector<8x128xf32>
    %6 = vector.extract_strided_slice %0 {offsets = [0, 1], sizes = [8, 1], strides = [1, 1]} : vector<8x2xf32> to vector<8x1xf32>
    %c1 = arith.constant 1 : index
    %c0_3 = arith.constant 0 : index
    %7 = vector.load %arg2[%c1, %c0_3] : memref<2x128xf32, #tpu.memory_space<vmem>>, vector<1x128xf32>
    %8 = vector.broadcast %6 : vector<8x1xf32> to vector<8x128xf32>
    %9 = vector.broadcast %7 : vector<1x128xf32> to vector<8x128xf32>
    %10 = arith.mulf %8, %9 : vector<8x128xf32>
    %11 = arith.addf %5, %10 : vector<8x128xf32>
    %c0_4 = arith.constant 0 : index
    %c0_5 = arith.constant 0 : index
    %12 = vector.load %arg3[%c0_4, %c0_5] : memref<1x128xf32, #tpu.memory_space<vmem>>, vector<1x128xf32>
    %13 = vector.broadcast %12 : vector<1x128xf32> to vector<8x128xf32>
    %14 = arith.addf %11, %13 : vector<8x128xf32>
    %cst = arith.constant 0.000000e+00 : f32
    %15 = vector.broadcast %cst : f32 to vector<8x128xf32>
    %16 = arith.maximumf %14, %15 : vector<8x128xf32>
    %17 = arith.truncf %16 : vector<8x128xf32> to vector<8x128xbf16>
    %c0_6 = arith.constant 0 : index
    %c0_7 = arith.constant 0 : index
    %18 = vector.load %arg4[%c0_6, %c0_7] : memref<128x256xbf16, #tpu.memory_space<vmem>>, vector<128x256xbf16>
    %cst_8 = arith.constant dense<0.000000e+00> : vector<8x256xf32>
    %19 = tpu.matmul %17, %18, %cst_8 {dimension_numbers = #tpu.dot_dimension_numbers<[1], [0], [0], [1], [0, 0, 1, 1], [], []>} : vector<8x128xbf16>, vector<128x256xbf16>, vector<8x256xf32> -> vector<8x256xf32>
    %c0_9 = arith.constant 0 : index
    %c0_10 = arith.constant 0 : index
    %20 = vector.load %arg5[%c0_9, %c0_10] : memref<1x256xf32, #tpu.memory_space<vmem>>, vector<1x256xf32>
    %21 = vector.broadcast %20 : vector<1x256xf32> to vector<8x256xf32>
    %22 = arith.addf %19, %21 : vector<8x256xf32>
    %cst_11 = arith.constant 0.000000e+00 : f32
    %23 = vector.broadcast %cst_11 : f32 to vector<8x256xf32>
    %24 = arith.maximumf %22, %23 : vector<8x256xf32>
    %25 = arith.truncf %24 : vector<8x256xf32> to vector<8x256xbf16>
    %c0_12 = arith.constant 0 : index
    %c0_13 = arith.constant 0 : index
    %26 = vector.load %arg6[%c0_12, %c0_13] : memref<256x128xbf16, #tpu.memory_space<vmem>>, vector<256x128xbf16>
    %cst_14 = arith.constant dense<0.000000e+00> : vector<8x128xf32>
    %27 = tpu.matmul %25, %26, %cst_14 {dimension_numbers = #tpu.dot_dimension_numbers<[1], [0], [0], [1], [0, 0, 1, 1], [], []>} : vector<8x256xbf16>, vector<256x128xbf16>, vector<8x128xf32> -> vector<8x128xf32>
    %c0_15 = arith.constant 0 : index
    %c0_16 = arith.constant 0 : index
    %28 = vector.load %arg7[%c0_15, %c0_16] : memref<1x128xf32, #tpu.memory_space<vmem>>, vector<1x128xf32>
    %29 = vector.broadcast %28 : vector<1x128xf32> to vector<8x128xf32>
    %30 = arith.addf %27, %29 : vector<8x128xf32>
    %cst_17 = arith.constant 0.000000e+00 : f32
    %31 = vector.broadcast %cst_17 : f32 to vector<8x128xf32>
    %32 = arith.maximumf %30, %31 : vector<8x128xf32>
    %33 = arith.truncf %32 : vector<8x128xf32> to vector<8x128xbf16>
    %c0_18 = arith.constant 0 : index
    %c0_19 = arith.constant 0 : index
    %34 = vector.load %arg8[%c0_18, %c0_19] : memref<128x64xbf16, #tpu.memory_space<vmem>>, vector<128x64xbf16>
    %cst_20 = arith.constant dense<0.000000e+00> : vector<8x64xf32>
    %35 = tpu.matmul %33, %34, %cst_20 {dimension_numbers = #tpu.dot_dimension_numbers<[1], [0], [0], [1], [0, 0, 1, 1], [], []>} : vector<8x128xbf16>, vector<128x64xbf16>, vector<8x64xf32> -> vector<8x64xf32>
    %c0_21 = arith.constant 0 : index
    %c0_22 = arith.constant 0 : index
    %36 = vector.load %arg9[%c0_21, %c0_22] : memref<1x64xf32, #tpu.memory_space<vmem>>, vector<1x64xf32>
    %37 = vector.broadcast %36 : vector<1x64xf32> to vector<8x64xf32>
    %38 = arith.addf %35, %37 : vector<8x64xf32>
    %cst_23 = arith.constant 0.000000e+00 : f32
    %39 = vector.broadcast %cst_23 : f32 to vector<8x64xf32>
    %40 = arith.maximumf %38, %39 : vector<8x64xf32>
    %41 = arith.truncf %40 : vector<8x64xf32> to vector<8x64xbf16>
    %c0_24 = arith.constant 0 : index
    %c0_25 = arith.constant 0 : index
    %42 = vector.load %arg10[%c0_24, %c0_25] : memref<64x128xbf16, #tpu.memory_space<vmem>>, vector<64x128xbf16>
    %cst_26 = arith.constant dense<0.000000e+00> : vector<8x128xf32>
    %43 = tpu.matmul %41, %42, %cst_26 {dimension_numbers = #tpu.dot_dimension_numbers<[1], [0], [0], [1], [0, 0, 1, 1], [], []>} : vector<8x64xbf16>, vector<64x128xbf16>, vector<8x128xf32> -> vector<8x128xf32>
    %c0_27 = arith.constant 0 : index
    %c0_28 = arith.constant 0 : index
    %44 = vector.load %arg11[%c0_27, %c0_28] : memref<1x128xf32, #tpu.memory_space<vmem>>, vector<1x128xf32>
    %45 = vector.broadcast %44 : vector<1x128xf32> to vector<8x128xf32>
    %46 = arith.addf %43, %45 : vector<8x128xf32>
    %c0_29 = arith.constant 0 : index
    %c0_30 = arith.constant 0 : index
    %47 = vector.load %arg12[%c0_29, %c0_30] : memref<8x128xf32, #tpu.memory_space<vmem>>, vector<8x128xf32>
    tpu.vector_store %arg12[%c0_29, %c0_30], %46 {strides = array<i32>} : memref<8x128xf32, #tpu.memory_space<vmem>>, vector<8x128xf32>,
    return
  }
  func.func @transform_0(%arg0: i32) -> (i32, i32) {
    %c0_i32 = arith.constant 0 : i32
    %c0_i32_0 = arith.constant 0 : i32
    return %arg0, %c0_i32 : i32, i32
  }
  func.func @transform_1(%arg0: i32) -> (i32, i32) {
    %c0_i32 = arith.constant 0 : i32
    %c0_i32_0 = arith.constant 0 : i32
    %c0_i32_1 = arith.constant 0 : i32
    return %c0_i32, %c0_i32_0 : i32, i32
  }
  func.func @transform_2(%arg0: i32) -> (i32, i32) {
    %c0_i32 = arith.constant 0 : i32
    %c0_i32_0 = arith.constant 0 : i32
    %c0_i32_1 = arith.constant 0 : i32
    return %c0_i32, %c0_i32_0 : i32, i32
  }
  func.func @transform_3(%arg0: i32) -> (i32, i32) {
    %c0_i32 = arith.constant 0 : i32
    %c0_i32_0 = arith.constant 0 : i32
    %c0_i32_1 = arith.constant 0 : i32
    return %c0_i32, %c0_i32_0 : i32, i32
  }
  func.func @transform_4(%arg0: i32) -> (i32, i32) {
    %c0_i32 = arith.constant 0 : i32
    %c0_i32_0 = arith.constant 0 : i32
    %c0_i32_1 = arith.constant 0 : i32
    return %c0_i32, %c0_i32_0 : i32, i32
  }
  func.func @transform_5(%arg0: i32) -> (i32, i32) {
    %c0_i32 = arith.constant 0 : i32
    %c0_i32_0 = arith.constant 0 : i32
    %c0_i32_1 = arith.constant 0 : i32
    return %c0_i32, %c0_i32_0 : i32, i32
  }
  func.func @transform_6(%arg0: i32) -> (i32, i32) {
    %c0_i32 = arith.constant 0 : i32
    %c0_i32_0 = arith.constant 0 : i32
    %c0_i32_1 = arith.constant 0 : i32
    return %c0_i32, %c0_i32_0 : i32, i32
  }
  func.func @transform_7(%arg0: i32) -> (i32, i32) {
    %c0_i32 = arith.constant 0 : i32
    %c0_i32_0 = arith.constant 0 : i32
    %c0_i32_1 = arith.constant 0 : i32
    return %c0_i32, %c0_i32_0 : i32, i32
  }
  func.func @transform_8(%arg0: i32) -> (i32, i32) {
    %c0_i32 = arith.constant 0 : i32
    %c0_i32_0 = arith.constant 0 : i32
    %c0_i32_1 = arith.constant 0 : i32
    return %c0_i32, %c0_i32_0 : i32, i32
  }
  func.func @transform_9(%arg0: i32) -> (i32, i32) {
    %c0_i32 = arith.constant 0 : i32
    %c0_i32_0 = arith.constant 0 : i32
    %c0_i32_1 = arith.constant 0 : i32
    return %c0_i32, %c0_i32_0 : i32, i32
  }
  func.func @transform_10(%arg0: i32) -> (i32, i32) {
    %c0_i32 = arith.constant 0 : i32
    %c0_i32_0 = arith.constant 0 : i32
    %c0_i32_1 = arith.constant 0 : i32
    return %c0_i32, %c0_i32_0 : i32, i32
  }
  func.func @transform_11(%arg0: i32) -> (i32, i32) {
    %c0_i32 = arith.constant 0 : i32
    %c0_i32_0 = arith.constant 0 : i32
    return %arg0, %c0_i32 : i32, i32
  }
}

</mosaic_0001>

<llo_original>
// kernel: tpu_custom_call.1
$region0: #{tpu_custom_call.1}
  #allocation0 [shape = 'u32[]', space=smem, size = 0x4, offset = 0x4, fixed_abs, tag = 'smem constant byte address 0x4 - core index']
  #allocation1 [shape = 'u32[144,128]{1,0:T(1,128)}', space=vmem, size = 0x12000, scoped, tag = 'internal scratch']
  %s0 = inlined_call_operand.vmem [shape: f32[8,2], index: 0, kind: input, shape index: {}]
  %s1 = inlined_call_operand.vmem [shape: f32[2,128], index: 1, kind: input, shape index: {}]
  %s2 = inlined_call_operand.vmem [shape: f32[1,128], index: 2, kind: input, shape index: {}]
  %s3 = inlined_call_operand.hbm [shape: bf16[128,256], index: 3, kind: input, shape index: {}]
  %s4 = inlined_call_operand.vmem [shape: f32[1,256], index: 4, kind: input, shape index: {}]
  %s5 = inlined_call_operand.hbm [shape: bf16[256,128], index: 5, kind: input, shape index: {}]
  %s6 = inlined_call_operand.vmem [shape: f32[1,128], index: 6, kind: input, shape index: {}]
  %s7 = inlined_call_operand.vmem [shape: bf16[128,64], index: 7, kind: input, shape index: {}]
  %s8 = inlined_call_operand.vmem [shape: f32[1,64], index: 8, kind: input, shape index: {}]
  %s9 = inlined_call_operand.vmem [shape: bf16[64,128], index: 9, kind: input, shape index: {}]
  %s10 = inlined_call_operand.vmem [shape: f32[1,128], index: 10, kind: input, shape index: {}]
  %s11 = inlined_call_operand.hbm [shape: f32[8,128], index: 11, kind: output, shape index: {}]
  %s12 = sld [smem:[#allocation0]]
  $region62: #{tpu_custom_call.1} parent=0
    _
  %s14 = ssub.s32 1, %s12
  %s15 = scalar_select 0, %s14, %s12
  $region1: #{tpu_custom_call.1} parent=0
    #allocation2 [shape = 'u8[65536]{0}', space=vmem, size = 0x10000, scoped, tag = 'input window, operand 3, single buffered']
    #allocation3 [shape = 's32[1]{0}', space=sflag, size = 0x4, scoped, tag = 'scoped memory for tpu_custom_call.1']
    #allocation4 [shape = 's32[1]{0}', space=sflag, size = 0x4, scoped, tag = 'scoped memory for tpu_custom_call.1']
    #allocation5 [shape = 'u8[65536]{0}', space=vmem, size = 0x10000, scoped, tag = 'input window, operand 5, single buffered']
    #allocation6 [shape = 's32[1]{0}', space=sflag, size = 0x4, scoped, tag = 'scoped memory for tpu_custom_call.1']
    #allocation7 [shape = 'u8[4096]{0}', space=vmem, size = 0x1000, scoped, tag = 'output window, operand 0, single buffered']
    %16 = vsyncpa [#allocation3], 0
    %17 = vsyncpa [#allocation6], 0
    %18 = vsyncpa [#allocation4], 0
    // Predicated region
    $region2: #{tpu_custom_call.1} parent=1 // pred_check
      _
    $region3: #{tpu_custom_call.1} parent=1 // pred_check_branch
      %20 = sbr.rel (0) target = $region5
    $region4: #{tpu_custom_call.1} parent=1 // pred_region
      _
    $region5: #{tpu_custom_call.1} parent=1 // pred_fallthru
      _
    // Predicated region
    $region6: #{tpu_custom_call.1} parent=1 // pred_check
      _
    $region7: #{tpu_custom_call.1} parent=1 // pred_check_branch
      %22 = sbr.rel (0) target = $region9
    $region8: #{tpu_custom_call.1} parent=1 // pred_region
      _
    $region9: #{tpu_custom_call.1} parent=1 // pred_fallthru
      _
    // Predicated region
    $region10: #{tpu_custom_call.1} parent=1 // pred_check
      _
    $region11: #{tpu_custom_call.1} parent=1 // pred_check_branch
      %24 = sbr.rel (0) target = $region13
    $region12: #{tpu_custom_call.1} parent=1 // pred_region
      _
    $region13: #{tpu_custom_call.1} parent=1 // pred_fallthru
      _
    // Predicated region
    $region14: #{tpu_custom_call.1} parent=1 // pred_check
      _
    $region15: #{tpu_custom_call.1} parent=1 // pred_check_branch
      %26 = sbr.rel (0) target = $region17
    $region16: #{tpu_custom_call.1} parent=1 // pred_region
      %s28 = ssub.s32 2048, 2048
      %29 = vsyncadd [#allocation3], %s28
      %s30 = sshll.u32 [#allocation2], 4
      %s31 = int_to_ptr.vmem [resolvable:$true] %s30
      %36 = dma.hbm_to_vmem [thread:$0]  %s3, 2048, %s31, [#allocation3], 128, 128, 8
    $region17: #{tpu_custom_call.1} parent=1 // pred_fallthru
      _
    // Predicated region
    $region18: #{tpu_custom_call.1} parent=1 // pred_check
      _
    $region19: #{tpu_custom_call.1} parent=1 // pred_check_branch
      %38 = sbr.rel (0) target = $region21
    $region20: #{tpu_custom_call.1} parent=1 // pred_region
      _
    $region21: #{tpu_custom_call.1} parent=1 // pred_fallthru
      _
    // Predicated region
    $region22: #{tpu_custom_call.1} parent=1 // pred_check
      _
    $region23: #{tpu_custom_call.1} parent=1 // pred_check_branch
      %40 = sbr.rel (0) target = $region25
    $region24: #{tpu_custom_call.1} parent=1 // pred_region
      %s42 = ssub.s32 2048, 2048
      %43 = vsyncadd [#allocation6], %s42
      %s44 = sshll.u32 [#allocation5], 4
      %s45 = int_to_ptr.vmem [resolvable:$true] %s44
      %50 = dma.hbm_to_vmem [thread:$0]  %s5, 2048, %s45, [#allocation6], 64, 64, 4
    $region25: #{tpu_custom_call.1} parent=1 // pred_fallthru
      _
    // Predicated region
    $region26: #{tpu_custom_call.1} parent=1 // pred_check
      _
    $region27: #{tpu_custom_call.1} parent=1 // pred_check_branch
      %52 = sbr.rel (0) target = $region29
    $region28: #{tpu_custom_call.1} parent=1 // pred_region
      _
    $region29: #{tpu_custom_call.1} parent=1 // pred_fallthru
      _
    // Predicated region
    $region30: #{tpu_custom_call.1} parent=1 // pred_check
      _
    $region31: #{tpu_custom_call.1} parent=1 // pred_check_branch
      %54 = sbr.rel (0) target = $region33
    $region32: #{tpu_custom_call.1} parent=1 // pred_region
      _
    $region33: #{tpu_custom_call.1} parent=1 // pred_fallthru
      _
    // Predicated region
    $region34: #{tpu_custom_call.1} parent=1 // pred_check
      _
    $region35: #{tpu_custom_call.1} parent=1 // pred_check_branch
      %56 = sbr.rel (0) target = $region37
    $region36: #{tpu_custom_call.1} parent=1 // pred_region
      _
    $region37: #{tpu_custom_call.1} parent=1 // pred_fallthru
      _
    // Predicated region
    $region38: #{tpu_custom_call.1} parent=1 // pred_check
      _
    $region39: #{tpu_custom_call.1} parent=1 // pred_check_branch
      %58 = sbr.rel (0) target = $region41
    $region40: #{tpu_custom_call.1} parent=1 // pred_region
      _
    $region41: #{tpu_custom_call.1} parent=1 // pred_fallthru
      _
    // Predicated region
    $region42: #{tpu_custom_call.1} parent=1 // pred_check
      _
    $region43: #{tpu_custom_call.1} parent=1 // pred_check_branch
      %60 = sbr.rel (0) target = $region45
    $region44: #{tpu_custom_call.1} parent=1 // pred_region
      _
    $region45: #{tpu_custom_call.1} parent=1 // pred_fallthru
      _
    // Predicated region
    $region46: #{tpu_custom_call.1} parent=1 // pred_check
      _
    $region47: #{tpu_custom_call.1} parent=1 // pred_check_branch
      %62 = sbr.rel (0) target = $region49
    $region48: #{tpu_custom_call.1} parent=1 // pred_region
      %63 = dma.done [#allocation3], 2048
    $region49: #{tpu_custom_call.1} parent=1 // pred_fallthru
      _
    // Predicated region
    $region50: #{tpu_custom_call.1} parent=1 // pred_check
      _
    $region51: #{tpu_custom_call.1} parent=1 // pred_check_branch
      %65 = sbr.rel (0) target = $region53
    $region52: #{tpu_custom_call.1} parent=1 // pred_region
      %66 = dma.done [#allocation6], 2048
    $region53: #{tpu_custom_call.1} parent=1 // pred_fallthru
      _
    %v68 = vld [vmem:[%s0] sm:$0xff]
    %v69 = vld [vmem:[%s1] sm:$0x1]
    %71 = vset.pattern.permute.xlu0 0
    %72 = vperm.xlu0 %71, %v68
    %v73 = vpop.permute.xlu0 %72
    %v75 = vlaneseq
    %v76 = vshrl.u32 %v75, 7
    %v77 = vsub.s32 0, %v76
    %v78 = vrot.slane %v69, %v77
    %v79 = vmul.f32 %v73, %v78
    %v80 = vld [vmem:[%s1 + $0x1] sm:$0x1]
    %81 = vset.pattern.permute.xlu0 1
    %82 = vperm.xlu0 %81, %v68
    %v83 = vpop.permute.xlu0 %82
    %v85 = vlaneseq
    %v86 = vshrl.u32 %v85, 7
    %v87 = vsub.s32 0, %v86
    %v88 = vrot.slane %v80, %v87
    %v89 = vmul.f32 %v83, %v88
    %v90 = vadd.f32 %v79, %v89
    %v91 = vld [vmem:[%s2] sm:$0x1]
    %v93 = vlaneseq
    %v94 = vshrl.u32 %v93, 7
    %v95 = vsub.s32 0, %v94
    %v96 = vrot.slane %v91, %v95
    %v98 = vadd.f32 %v90, %v96
    %v99 = vmax.f32 %v98, 0.0
    %v100 = vpack.c.bf16 %v99, %v99
    %v101 = vld [vmem:[#allocation2] sm:$0xff]
    %v102 = vld [vmem:[#allocation2 + $0x8] sm:$0xff]
    %v103 = vld [vmem:[#allocation2 + $0x10] sm:$0xff]
    %v104 = vld [vmem:[#allocation2 + $0x18] sm:$0xff]
    %v105 = vld [vmem:[#allocation2 + $0x20] sm:$0xff]
    %v106 = vld [vmem:[#allocation2 + $0x28] sm:$0xff]
    %v107 = vld [vmem:[#allocation2 + $0x30] sm:$0xff]
    %v108 = vld [vmem:[#allocation2 + $0x38] sm:$0xff]
    %v109 = vld [vmem:[#allocation2 + $0x40] sm:$0xff]
    %v110 = vld [vmem:[#allocation2 + $0x48] sm:$0xff]
    %v111 = vld [vmem:[#allocation2 + $0x50] sm:$0xff]
    %v112 = vld [vmem:[#allocation2 + $0x58] sm:$0xff]
    %v113 = vld [vmem:[#allocation2 + $0x60] sm:$0xff]
    %v114 = vld [vmem:[#allocation2 + $0x68] sm:$0xff]
    %v115 = vld [vmem:[#allocation2 + $0x70] sm:$0xff]
    %v116 = vld [vmem:[#allocation2 + $0x78] sm:$0xff]
    %v117 = vld [vmem:[%s4] sm:$0x3]
    %v119 = vlaneseq
    %v120 = vshrl.u32 %v119, 7
    %v121 = vsub.s32 0, %v120
    %v122 = vrot.slane %v117, %v121
    %v123 = vlaneseq
    %v124 = vshrl.u32 %v123, 7
    %v125 = vsub.s32 1, %v124
    %v126 = vrot.slane %v117, %v125
    %v145 = vunpack.c.l.b16 %v101
    %v146 = vunpack.c.h.b16 %v101
    %v147 = vunpack.c.l.b16 %v102
    %v148 = vunpack.c.h.b16 %v102
    %v149 = vunpack.c.l.b16 %v103
    %v150 = vunpack.c.h.b16 %v103
    %v151 = vunpack.c.l.b16 %v104
    %v152 = vunpack.c.h.b16 %v104
    %v153 = vunpack.c.l.b16 %v105
    %v154 = vunpack.c.h.b16 %v105
    %v155 = vunpack.c.l.b16 %v106
    %v156 = vunpack.c.h.b16 %v106
    %v157 = vunpack.c.l.b16 %v107
    %v158 = vunpack.c.h.b16 %v107
    %v159 = vunpack.c.l.b16 %v108
    %v160 = vunpack.c.h.b16 %v108
    %v161 = vunpack.c.l.b16 %v109
    %v162 = vunpack.c.h.b16 %v109
    %v163 = vunpack.c.l.b16 %v110
    %v164 = vunpack.c.h.b16 %v110
    %v165 = vunpack.c.l.b16 %v111
    %v166 = vunpack.c.h.b16 %v111
    %v167 = vunpack.c.l.b16 %v112
    %v168 = vunpack.c.h.b16 %v112
    %v169 = vunpack.c.l.b16 %v113
    %v170 = vunpack.c.h.b16 %v113
    %v171 = vunpack.c.l.b16 %v114
    %v172 = vunpack.c.h.b16 %v114
    %v173 = vunpack.c.l.b16 %v115
    %v174 = vunpack.c.h.b16 %v115
    %v175 = vunpack.c.l.b16 %v116
    %v176 = vunpack.c.h.b16 %v116
    %v177 = vpack.c.b16 %v147, %v145
    %v178 = vpack.c.b16 %v148, %v146
    %v179 = vpack.c.b16 %v151, %v149
    %v180 = vpack.c.b16 %v152, %v150
    %v181 = vpack.c.b16 %v155, %v153
    %v182 = vpack.c.b16 %v156, %v154
    %v183 = vpack.c.b16 %v159, %v157
    %v184 = vpack.c.b16 %v160, %v158
    %v185 = vpack.c.b16 %v163, %v161
    %v186 = vpack.c.b16 %v164, %v162
    %v187 = vpack.c.b16 %v167, %v165
    %v188 = vpack.c.b16 %v168, %v166
    %v189 = vpack.c.b16 %v171, %v169
    %v190 = vpack.c.b16 %v172, %v170
    %v191 = vpack.c.b16 %v175, %v173
    %v192 = vpack.c.b16 %v176, %v174
    %209 = vmatprep.subr.bf16.mxu0 %v192
    %210 = vmatpush1.bf16.msra.mxu0 %v191
    %211 = vmatprep.subr.bf16.mxu0 %v190
    %212 = vmatpush1.bf16.msra.mxu0 %v189
    %213 = vmatprep.subr.bf16.mxu0 %v188
    %214 = vmatpush1.bf16.msra.mxu0 %v187
    %215 = vmatprep.subr.bf16.mxu0 %v186
    %216 = vmatpush1.bf16.msra.mxu0 %v185
    %217 = vmatprep.subr.bf16.mxu0 %v184
    %218 = vmatpush1.bf16.msra.mxu0 %v183
    %219 = vmatprep.subr.bf16.mxu0 %v182
    %220 = vmatpush1.bf16.msra.mxu0 %v181
    %221 = vmatprep.subr.bf16.mxu0 %v180
    %222 = vmatpush1.bf16.msra.mxu0 %v179
    %223 = vmatprep.subr.bf16.mxu0 %v178
    %224 = vmatpush1.bf16.msra.mxu0 %v177
    %225 = vmatprep.subr.bf16.mxu0 0
    %226 = vmatpush2.bf16.msra.mxu0 0
    %227 = vmatprep.subr.bf16.mxu0 0
    %228 = vmatpush2.bf16.msra.mxu0 0
    %229 = vmatprep.subr.bf16.mxu0 0
    %230 = vmatpush2.bf16.msra.mxu0 0
    %231 = vmatprep.subr.bf16.mxu0 0
    %232 = vmatpush2.bf16.msra.mxu0 0
    %233 = vmatprep.subr.bf16.mxu0 0
    %234 = vmatpush2.bf16.msra.mxu0 0
    %235 = vmatprep.subr.bf16.mxu0 0
    %236 = vmatpush2.bf16.msra.mxu0 0
    %237 = vmatprep.subr.bf16.mxu0 0
    %238 = vmatpush2.bf16.msra.mxu0 0
    %239 = vmatprep.subr.bf16.mxu0 0
    %240 = vmatpush2.bf16.msra.mxu0 0
    %241 = vmatprep.mubr.bf16.mxu0 0
    %242 = vmatmul.mubr.bf16.gmra.mxu0 %v100
    %v243 = vpop.f32.mrf.mxu0
    %v244 = vadd.f32 %v122, %v243
    %v245 = vpop.f32.mrf.mxu0
    %v246 = vadd.f32 %v126, %v245
    %v247 = vpop.f32.mrf.mxu0
    %v248 = vpop.f32.mrf.mxu0
    %249 = vdwg.mxu0
    %v250 = vmax.f32 %v244, 0.0
    %v251 = vmax.f32 %v246, 0.0
    %v252 = vpack.c.bf16 %v250, %v250
    %v253 = vpack.c.bf16 %v251, %v251
    %v254 = vld [vmem:[#allocation5] sm:$0xf]
    %v255 = vld [vmem:[#allocation5 + $0x4] sm:$0xf]
    %v256 = vld [vmem:[#allocation5 + $0x8] sm:$0xf]
    %v257 = vld [vmem:[#allocation5 + $0xc] sm:$0xf]
    %v258 = vld [vmem:[#allocation5 + $0x10] sm:$0xf]
    %v259 = vld [vmem:[#allocation5 + $0x14] sm:$0xf]
    %v260 = vld [vmem:[#allocation5 + $0x18] sm:$0xf]
    %v261 = vld [vmem:[#allocation5 + $0x1c] sm:$0xf]
    %v262 = vld [vmem:[#allocation5 + $0x20] sm:$0xf]
    %v263 = vld [vmem:[#allocation5 + $0x24] sm:$0xf]
    %v264 = vld [vmem:[#allocation5 + $0x28] sm:$0xf]
    %v265 = vld [vmem:[#allocation5 + $0x2c] sm:$0xf]
    %v266 = vld [vmem:[#allocation5 + $0x30] sm:$0xf]
    %v267 = vld [vmem:[#allocation5 + $0x34] sm:$0xf]
    %v268 = vld [vmem:[#allocation5 + $0x38] sm:$0xf]
    %v269 = vld [vmem:[#allocation5 + $0x3c] sm:$0xf]
    %v270 = vld [vmem:[#allocation5 + $0x40] sm:$0xf]
    %v271 = vld [vmem:[#allocation5 + $0x44] sm:$0xf]
    %v272 = vld [vmem:[#allocation5 + $0x48] sm:$0xf]
    %v273 = vld [vmem:[#allocation5 + $0x4c] sm:$0xf]
    %v274 = vld [vmem:[#allocation5 + $0x50] sm:$0xf]
    %v275 = vld [vmem:[#allocation5 + $0x54] sm:$0xf]
    %v276 = vld [vmem:[#allocation5 + $0x58] sm:$0xf]
    %v277 = vld [vmem:[#allocation5 + $0x5c] sm:$0xf]
    %v278 = vld [vmem:[#allocation5 + $0x60] sm:$0xf]
    %v279 = vld [vmem:[#allocation5 + $0x64] sm:$0xf]
    %v280 = vld [vmem:[#allocation5 + $0x68] sm:$0xf]
    %v281 = vld [vmem:[#allocation5 + $0x6c] sm:$0xf]
    %v282 = vld [vmem:[#allocation5 + $0x70] sm:$0xf]
    %v283 = vld [vmem:[#allocation5 + $0x74] sm:$0xf]
    %v284 = vld [vmem:[#allocation5 + $0x78] sm:$0xf]
    %v285 = vld [vmem:[#allocation5 + $0x7c] sm:$0xf]
    %v286 = vld [vmem:[%s6] sm:$0x1]
    %v288 = vlaneseq
    %v289 = vshrl.u32 %v288, 7
    %v290 = vsub.s32 0, %v289
    %v291 = vrot.slane %v286, %v290
    %v325 = vunpack.c.l.b16 %v254
    %v326 = vunpack.c.l.b16 %v255
    %v327 = vunpack.c.l.b16 %v256
    %v328 = vunpack.c.l.b16 %v257
    %v329 = vunpack.c.l.b16 %v258
    %v330 = vunpack.c.l.b16 %v259
    %v331 = vunpack.c.l.b16 %v260
    %v332 = vunpack.c.l.b16 %v261
    %v333 = vunpack.c.l.b16 %v262
    %v334 = vunpack.c.l.b16 %v263
    %v335 = vunpack.c.l.b16 %v264
    %v336 = vunpack.c.l.b16 %v265
    %v337 = vunpack.c.l.b16 %v266
    %v338 = vunpack.c.l.b16 %v267
    %v339 = vunpack.c.l.b16 %v268
    %v340 = vunpack.c.l.b16 %v269
    %v341 = vunpack.c.l.b16 %v270
    %v342 = vunpack.c.l.b16 %v271
    %v343 = vunpack.c.l.b16 %v272
    %v344 = vunpack.c.l.b16 %v273
    %v345 = vunpack.c.l.b16 %v274
    %v346 = vunpack.c.l.b16 %v275
    %v347 = vunpack.c.l.b16 %v276
    %v348 = vunpack.c.l.b16 %v277
    %v349 = vunpack.c.l.b16 %v278
    %v350 = vunpack.c.l.b16 %v279
    %v351 = vunpack.c.l.b16 %v280
    %v352 = vunpack.c.l.b16 %v281
    %v353 = vunpack.c.l.b16 %v282
    %v354 = vunpack.c.l.b16 %v283
    %v355 = vunpack.c.l.b16 %v284
    %v356 = vunpack.c.l.b16 %v285
    %v357 = vpack.c.b16 %v326, %v325
    %v358 = vpack.c.b16 %v328, %v327
    %v359 = vpack.c.b16 %v330, %v329
    %v360 = vpack.c.b16 %v332, %v331
    %v361 = vpack.c.b16 %v334, %v333
    %v362 = vpack.c.b16 %v336, %v335
    %v363 = vpack.c.b16 %v338, %v337
    %v364 = vpack.c.b16 %v340, %v339
    %v365 = vpack.c.b16 %v342, %v341
    %v366 = vpack.c.b16 %v344, %v343
    %v367 = vpack.c.b16 %v346, %v345
    %v368 = vpack.c.b16 %v348, %v347
    %v369 = vpack.c.b16 %v350, %v349
    %v370 = vpack.c.b16 %v352, %v351
    %v371 = vpack.c.b16 %v354, %v353
    %v372 = vpack.c.b16 %v356, %v355
    %389 = vmatprep.subr.bf16.mxu0 0
    %390 = vmatpush1.bf16.msra.mxu0 %v364
    %391 = vmatprep.subr.bf16.mxu0 0
    %392 = vmatpush1.bf16.msra.mxu0 %v363
    %393 = vmatprep.subr.bf16.mxu0 0
    %394 = vmatpush1.bf16.msra.mxu0 %v362
    %395 = vmatprep.subr.bf16.mxu0 0
    %396 = vmatpush1.bf16.msra.mxu0 %v361
    %397 = vmatprep.subr.bf16.mxu0 0
    %398 = vmatpush1.bf16.msra.mxu0 %v360
    %399 = vmatprep.subr.bf16.mxu0 0
    %400 = vmatpush1.bf16.msra.mxu0 %v359
    %401 = vmatprep.subr.bf16.mxu0 0
    %402 = vmatpush1.bf16.msra.mxu0 %v358
    %403 = vmatprep.subr.bf16.mxu0 0
    %404 = vmatpush1.bf16.msra.mxu0 %v357
    %405 = vmatprep.subr.bf16.mxu0 0
    %406 = vmatpush2.bf16.msra.mxu0 %v372
    %407 = vmatprep.subr.bf16.mxu0 0
    %408 = vmatpush2.bf16.msra.mxu0 %v371
    %409 = vmatprep.subr.bf16.mxu0 0
    %410 = vmatpush2.bf16.msra.mxu0 %v370
    %411 = vmatprep.subr.bf16.mxu0 0
    %412 = vmatpush2.bf16.msra.mxu0 %v369
    %413 = vmatprep.subr.bf16.mxu0 0
    %414 = vmatpush2.bf16.msra.mxu0 %v368
    %415 = vmatprep.subr.bf16.mxu0 0
    %416 = vmatpush2.bf16.msra.mxu0 %v367
    %417 = vmatprep.subr.bf16.mxu0 0
    %418 = vmatpush2.bf16.msra.mxu0 %v366
    %419 = vmatprep.subr.bf16.mxu0 0
    %420 = vmatpush2.bf16.msra.mxu0 %v365
    %421 = vmatprep.mubr.bf16.mxu0 %v253
    %422 = vmatmul.mubr.bf16.gmra.mxu0 %v252
    %v423 = vpop.f32.mrf.mxu0
    %v424 = vadd.f32 %v291, %v423
    %v425 = vpop.f32.mrf.mxu0
    %v426 = vpop.f32.mrf.mxu0
    %v427 = vpop.f32.mrf.mxu0
    %428 = vdwg.mxu0
    %v429 = vmax.f32 %v424, 0.0
    %v430 = vpack.c.bf16 %v429, %v429
    %v431 = vld [vmem:[%s7] sm:$0xf]
    %v432 = vld [vmem:[%s7 + $0x4] sm:$0xf]
    %v433 = vld [vmem:[%s7 + $0x8] sm:$0xf]
    %v434 = vld [vmem:[%s7 + $0xc] sm:$0xf]
    %v435 = vld [vmem:[%s7 + $0x10] sm:$0xf]
    %v436 = vld [vmem:[%s7 + $0x14] sm:$0xf]
    %v437 = vld [vmem:[%s7 + $0x18] sm:$0xf]
    %v438 = vld [vmem:[%s7 + $0x1c] sm:$0xf]
    %v439 = vld [vmem:[%s7 + $0x20] sm:$0xf]
    %v440 = vld [vmem:[%s7 + $0x24] sm:$0xf]
    %v441 = vld [vmem:[%s7 + $0x28] sm:$0xf]
    %v442 = vld [vmem:[%s7 + $0x2c] sm:$0xf]
    %v443 = vld [vmem:[%s7 + $0x30] sm:$0xf]
    %v444 = vld [vmem:[%s7 + $0x34] sm:$0xf]
    %v445 = vld [vmem:[%s7 + $0x38] sm:$0xf]
    %v446 = vld [vmem:[%s7 + $0x3c] sm:$0xf]
    %v447 = vld [vmem:[%s8] sm:$0x1]
    %v449 = vlaneseq
    %v450 = vshrl.u32 %v449, 7
    %v451 = vsub.s32 0, %v450
    %v452 = vrot.slane %v447, %v451
    %v470 = vunpack.c.l.b16 %v431
    %v471 = vunpack.c.l.b16 %v432
    %v472 = vunpack.c.l.b16 %v433
    %v473 = vunpack.c.l.b16 %v434
    %v474 = vunpack.c.l.b16 %v435
    %v475 = vunpack.c.l.b16 %v436
    %v476 = vunpack.c.l.b16 %v437
    %v477 = vunpack.c.l.b16 %v438
    %v478 = vunpack.c.l.b16 %v439
    %v479 = vunpack.c.l.b16 %v440
    %v480 = vunpack.c.l.b16 %v441
    %v481 = vunpack.c.l.b16 %v442
    %v482 = vunpack.c.l.b16 %v443
    %v483 = vunpack.c.l.b16 %v444
    %v484 = vunpack.c.l.b16 %v445
    %v485 = vunpack.c.l.b16 %v446
    %v486 = vpack.c.b16 %v471, %v470
    %v487 = vpack.c.b16 %v473, %v472
    %v488 = vpack.c.b16 %v475, %v474
    %v489 = vpack.c.b16 %v477, %v476
    %v490 = vpack.c.b16 %v479, %v478
    %v491 = vpack.c.b16 %v481, %v480
    %v492 = vpack.c.b16 %v483, %v482
    %v493 = vpack.c.b16 %v485, %v484
    %502 = vmatprep.subr.bf16.mxu0 0
    %503 = vmatpush1.bf16.msra.mxu0 %v493
    %504 = vmatprep.subr.bf16.mxu0 0
    %505 = vmatpush1.bf16.msra.mxu0 %v492
    %506 = vmatprep.subr.bf16.mxu0 0
    %507 = vmatpush1.bf16.msra.mxu0 %v491
    %508 = vmatprep.subr.bf16.mxu0 0
    %509 = vmatpush1.bf16.msra.mxu0 %v490
    %510 = vmatprep.subr.bf16.mxu0 0
    %511 = vmatpush1.bf16.msra.mxu0 %v489
    %512 = vmatprep.subr.bf16.mxu0 0
    %513 = vmatpush1.bf16.msra.mxu0 %v488
    %514 = vmatprep.subr.bf16.mxu0 0
    %515 = vmatpush1.bf16.msra.mxu0 %v487
    %516 = vmatprep.subr.bf16.mxu0 0
    %517 = vmatpush1.bf16.msra.mxu0 %v486
    %518 = vmatprep.subr.bf16.mxu0 0
    %519 = vmatpush2.bf16.msra.mxu0 0
    %520 = vmatprep.subr.bf16.mxu0 0
    %521 = vmatpush2.bf16.msra.mxu0 0
    %522 = vmatprep.subr.bf16.mxu0 0
    %523 = vmatpush2.bf16.msra.mxu0 0
    %524 = vmatprep.subr.bf16.mxu0 0
    %525 = vmatpush2.bf16.msra.mxu0 0
    %526 = vmatprep.subr.bf16.mxu0 0
    %527 = vmatpush2.bf16.msra.mxu0 0
    %528 = vmatprep.subr.bf16.mxu0 0
    %529 = vmatpush2.bf16.msra.mxu0 0
    %530 = vmatprep.subr.bf16.mxu0 0
    %531 = vmatpush2.bf16.msra.mxu0 0
    %532 = vmatprep.subr.bf16.mxu0 0
    %533 = vmatpush2.bf16.msra.mxu0 0
    %534 = vmatprep.mubr.bf16.mxu0 0
    %535 = vmatmul.mubr.bf16.gmra.mxu0 %v430
    %v536 = vpop.f32.mrf.mxu0
    %v537 = vadd.f32 %v452, %v536
    %v538 = vpop.f32.mrf.mxu0
    %v539 = vpop.f32.mrf.mxu0
    %v540 = vpop.f32.mrf.mxu0
    %541 = vdwg.mxu0
    %v542 = vmax.f32 %v537, 0.0
    %v543 = vpack.c.bf16 %v542, %v542
    %v544 = vld [vmem:[%s9] sm:$0xf]
    %v545 = vld [vmem:[%s9 + $0x4] sm:$0xf]
    %v546 = vld [vmem:[%s9 + $0x8] sm:$0xf]
    %v547 = vld [vmem:[%s9 + $0xc] sm:$0xf]
    %v548 = vld [vmem:[%s9 + $0x10] sm:$0xf]
    %v549 = vld [vmem:[%s9 + $0x14] sm:$0xf]
    %v550 = vld [vmem:[%s9 + $0x18] sm:$0xf]
    %v551 = vld [vmem:[%s9 + $0x1c] sm:$0xf]
    %v552 = vld [vmem:[%s10] sm:$0x1]
    %v554 = vlaneseq
    %v555 = vshrl.u32 %v554, 7
    %v556 = vsub.s32 0, %v555
    %v557 = vrot.slane %v552, %v556
    %v567 = vunpack.c.l.b16 %v544
    %v568 = vunpack.c.l.b16 %v545
    %v569 = vunpack.c.l.b16 %v546
    %v570 = vunpack.c.l.b16 %v547
    %v571 = vunpack.c.l.b16 %v548
    %v572 = vunpack.c.l.b16 %v549
    %v573 = vunpack.c.l.b16 %v550
    %v574 = vunpack.c.l.b16 %v551
    %v575 = vpack.c.b16 %v568, %v567
    %v576 = vpack.c.b16 %v570, %v569
    %v577 = vpack.c.b16 %v572, %v571
    %v578 = vpack.c.b16 %v574, %v573
    %vm583 = vcmask 523264
    %v585 = vsel %vm583, %v543, 0
    %587 = vmatprep.subr.bf16.mxu0 0
    %588 = vmatpush1.bf16.msra.mxu0 0
    %589 = vmatprep.subr.bf16.mxu0 0
    %590 = vmatpush1.bf16.msra.mxu0 0
    %591 = vmatprep.subr.bf16.mxu0 0
    %592 = vmatpush1.bf16.msra.mxu0 0
    %593 = vmatprep.subr.bf16.mxu0 0
    %594 = vmatpush1.bf16.msra.mxu0 0
    %595 = vmatprep.subr.bf16.mxu0 0
    %596 = vmatpush1.bf16.msra.mxu0 %v578
    %597 = vmatprep.subr.bf16.mxu0 0
    %598 = vmatpush1.bf16.msra.mxu0 %v577
    %599 = vmatprep.subr.bf16.mxu0 0
    %600 = vmatpush1.bf16.msra.mxu0 %v576
    %601 = vmatprep.subr.bf16.mxu0 0
    %602 = vmatpush1.bf16.msra.mxu0 %v575
    %603 = vmatprep.subr.bf16.mxu0 0
    %604 = vmatpush2.bf16.msra.mxu0 0
    %605 = vmatprep.subr.bf16.mxu0 0
    %606 = vmatpush2.bf16.msra.mxu0 0
    %607 = vmatprep.subr.bf16.mxu0 0
    %608 = vmatpush2.bf16.msra.mxu0 0
    %609 = vmatprep.subr.bf16.mxu0 0
    %610 = vmatpush2.bf16.msra.mxu0 0
    %611 = vmatprep.subr.bf16.mxu0 0
    %612 = vmatpush2.bf16.msra.mxu0 0
    %613 = vmatprep.subr.bf16.mxu0 0
    %614 = vmatpush2.bf16.msra.mxu0 0
    %615 = vmatprep.subr.bf16.mxu0 0
    %616 = vmatpush2.bf16.msra.mxu0 0
    %617 = vmatprep.subr.bf16.mxu0 0
    %618 = vmatpush2.bf16.msra.mxu0 0
    %619 = vmatprep.mubr.bf16.mxu0 0
    %620 = vmatmul.mubr.bf16.gmra.mxu0 %v585
    %v621 = vpop.f32.mrf.mxu0
    %v622 = vadd.f32 %v557, %v621
    %v623 = vpop.f32.mrf.mxu0
    %v624 = vpop.f32.mrf.mxu0
    %v625 = vpop.f32.mrf.mxu0
    %626 = vdwg.mxu0
    %627 = vst [vmem:[#allocation7] sm:$0xff] %v622
    // Predicated region
    $region54: #{tpu_custom_call.1} parent=1 // pred_check
      _
    $region55: #{tpu_custom_call.1} parent=1 // pred_check_branch
      %629 = sbr.rel (0) target = $region57
    $region56: #{tpu_custom_call.1} parent=1 // pred_region
      %s631 = ssub.s32 128, 128
      %632 = vsyncadd [#allocation4], %s631
      %s634 = sshll.u32 [#allocation7], 4
      %s635 = int_to_ptr.vmem [resolvable:$true] %s634
      %637 = dma.vmem_to_hbm [thread:$0]  %s635, 128, %s11, [#allocation4]
    $region57: #{tpu_custom_call.1} parent=1 // pred_fallthru
      _
    // Predicated region
    $region58: #{tpu_custom_call.1} parent=1 // pred_check
      _
    $region59: #{tpu_custom_call.1} parent=1 // pred_check_branch
      %639 = sbr.rel (0) target = $region61
    $region60: #{tpu_custom_call.1} parent=1 // pred_region
      %640 = dma.done [#allocation4], 128
    $region61: #{tpu_custom_call.1} parent=1 // pred_fallthru
      _
    %641 = vsyncpa [#allocation3], 1
    %642 = vsyncpa [#allocation6], 1
    %643 = vsyncpa [#allocation4], 1

</llo_original>
